<compile_context>
chip_gen: v7x
topology: tpu7x:2x2x1
jax: 0.10.0
libtpu: 0.0.40
codegen_flags: <defaults>
</compile_context>

<pallas_src>
import functools

import jax
import jax.numpy as jnp
from jax import lax
from jax.experimental import pallas as pl
from jax.experimental.pallas import tpu as pltpu


def _disparity_regression_kernel(x_ref, o_ref, *, start_disp, win_size,
                                 ch, cw, unroll):
    # x_ref block: (1, D, TH, TW) ; o_ref block: (1, TH, TW)
    D = x_ref.shape[1]
    TH, TW = o_ref.shape[1], o_ref.shape[2]
    n_r, n_c = TH // ch, TW // cw

    def chunk_slice(k, r0, c0):
        # one (ch, cw) disparity slice, upcast to f32 (supports bf16 inputs)
        return x_ref[0, k, pl.ds(r0, ch), pl.ds(c0, cw)].astype(jnp.float32)

    def process_chunk(r0, c0):
        if win_size > 0:
            w = win_size

            # ---- pass 1: running max / argmax over D (carries stay in vregs)
            def argmax_body(k, carry):
                m_val, m_idx = carry
                xk = chunk_slice(k, r0, c0)
                better = xk > m_val                    # strict '>' keeps first hit
                return (jnp.where(better, xk, m_val),
                        jnp.where(better, k, m_idx))

            m_val0 = chunk_slice(0, r0, c0)
            m_idx0 = jnp.zeros((ch, cw), jnp.int32)
            _, m_idx = lax.fori_loop(1, D, argmax_body, (m_val0, m_idx0),
                                     unroll=unroll)

            # ---- pass 2: window-weighted accumulation ------------------------
            # torch clips (max_d + d) to [0, D-1]; clipped offsets pile up on
            # the boundary slices:
            #   mult(k=0)     = relu(w + 1 - m)
            #   mult(k=D-1)   = relu(m + w + 2 - D)
            #   mult(0<k<D-1) = 1 iff |k - m| <= w
            w0 = jnp.maximum(0, (w + 1) - m_idx).astype(jnp.float32)      # k = 0
            wD = jnp.maximum(0, m_idx + (w + 2 - D)).astype(jnp.float32)  # k = D-1

            x0 = chunk_slice(0, r0, c0)
            xD = chunk_slice(D - 1, r0, c0)
            den = w0 * x0 + wD * xD
            num = wD * xD * jnp.float32(D - 1)         # k=0 contributes 0 to num

            lo = m_idx - w                             # hoisted window lower bound
            width = jnp.uint32(2 * w)

            def acc_body(k, carry):
                num, den = carry
                xk = chunk_slice(k, r0, c0)
                # unsigned range check: in-window  <=>  0 <= k - lo <= 2w
                rel = pltpu.bitcast(k - lo, jnp.uint32)
                wk = jnp.where(rel <= width, xk, jnp.float32(0.0))
                return num + wk * k.astype(jnp.float32), den + wk

            num, den = lax.fori_loop(1, D - 1, acc_body, (num, den),
                                     unroll=unroll)

            den = den + jnp.float32(1e-8)
            inv = pl.reciprocal(den, approx=True)      # EUP slot, off the VALU path
            inv = inv * (jnp.float32(2.0) - den * inv) # one Newton step -> ~f32 exact
            out = num * inv + jnp.float32(start_disp)
        else:
            # soft-argmax: out = sum_k x[k] * (k + start_disp)
            def body(k, acc):
                d = (k + start_disp).astype(jnp.float32)
                return acc + chunk_slice(k, r0, c0) * d

            out = lax.fori_loop(0, D, body, jnp.zeros((ch, cw), jnp.float32),
                                unroll=unroll)

        o_ref[0, pl.ds(r0, ch), pl.ds(c0, cw)] = out.astype(o_ref.dtype)

    # Chunk loop: big DMA block, small in-register compute chunks.
    @pl.loop(0, n_r)
    def _(r):
        r0 = pl.multiple_of(r * ch, ch)

        @pl.loop(0, n_c)
        def _(c):
            c0 = pl.multiple_of(c * cw, cw)
            process_chunk(r0, c0)


def _pick_tiles(D, H, W, itemsize, budget_bytes, batch):
    """Choose the DMA block (TH, TW) and the in-kernel compute chunk (CH, CW).

    - TW prefers the full row W (contiguous HBM lines, widest lane-dense vst),
      falling back to 128-multiple divisors of W only if a full row cannot fit.
    - TH is the largest native-tile-aligned divisor of H whose double-buffered
      block fits the VMEM budget, shrunk (when possible) until the parallel
      grid has >= 8 steps so both v7x TensorCores stay load-balanced.
    - (CH, CW) is the per-iteration in-register compute chunk: one native
      sublane tile of rows x <= 512 lanes, so D-loop carries stay in vregs.
    """
    ch = {4: 8, 2: 16, 1: 32}.get(itemsize, 8)     # native row tile per dtype

    def block_bytes(th, tw):
        # double-buffered input block + double-buffered f32 output block
        return 2 * D * th * tw * itemsize + 2 * th * tw * 4

    th_cands = sorted({c for c in (1024, 512, 256, 128, 64, 32, 16, 8, H)
                       if H % c == 0 and c % ch == 0}, reverse=True)
    if not th_cands:
        th_cands = [H]                              # irregular H: full-height block

    tw_cands = [W] + [c for c in (512, 384, 256, 128) if W % c == 0 and c < W]

    choice = None
    for tw in tw_cands:
        fitting = [c for c in th_cands if block_bytes(c, tw) <= budget_bytes]
        if fitting:
            balanced = [c for c in fitting
                        if batch * (H // c) * (W // tw) >= 8]
            choice = (balanced[0] if balanced else fitting[0], tw)
            break
    if choice is None:                              # nothing fits: smallest legal block
        choice = (th_cands[-1], tw_cands[-1])
    TH, TW = choice

    CH = ch if TH % ch == 0 else TH
    CW = next((c for c in (512, 384, 256, 128) if TW % c == 0), TW)
    return TH, TW, CH, CW


def _vmem_capacity_bytes():
    try:
        info = pltpu.get_tpu_info()
        cap = getattr(info, "vmem_capacity_bytes", None)
        if cap:
            return int(cap)
    except Exception:
        pass
    return 64 * 1024 * 1024                         # conservative (v7x per-core VMEM)


def disparity_regression(x, *, start_disp, maxdisp, win_size,
                         vmem_budget_bytes=None):
    """x: (B, D, H, W) probability volume over disparity dim D (= maxdisp).
    Accepts float32 or bfloat16 input; accumulation is float32, output float32.
    (Tip: feeding bf16 halves HBM traffic on v5e/v6e where this kernel is
    memory-bound; the kernel upcasts per-slice.)"""
    B, D, H, W = x.shape
    assert D == maxdisp, "disparity channel dim must equal maxdisp"
    assert D >= 2, "maxdisp must be >= 2 (boundary slices alias for D == 1)"

    itemsize = jnp.dtype(x.dtype).itemsize
    cap = _vmem_capacity_bytes()
    if vmem_budget_bytes is None:
        # ~40% of physical VMEM: large streaming blocks on v5e/v6e (128 MiB),
        # automatically smaller on v7x (64 MiB).
        vmem_budget_bytes = int(cap * 0.4)
    vmem_budget_bytes = min(vmem_budget_bytes, int(cap * 0.8))

    TH, TW, CH, CW = _pick_tiles(D, H, W, itemsize, vmem_budget_bytes, B)
    assert H % TH == 0 and W % TW == 0

    # Scoped VMEM limit derived from the actual double-buffered block bytes
    # (fixes budget/limit mismatch), clamped below physical capacity.
    needed = 2 * D * TH * TW * itemsize + 2 * TH * TW * 4
    vmem_limit = int(min(cap * 0.9, max(32 << 20, needed + (16 << 20))))

    unroll = True if D <= 64 else 8                 # full unroll for small D

    kernel = functools.partial(
        _disparity_regression_kernel, start_disp=start_disp,
        win_size=win_size, ch=CH, cw=CW, unroll=unroll)

    grid = (B, H // TH, W // TW)
    return pl.pallas_call(
        kernel,
        out_shape=jax.ShapeDtypeStruct((B, H, W), jnp.float32),
        grid=grid,
        in_specs=[pl.BlockSpec((1, D, TH, TW), lambda b, h, w: (b, 0, h, w))],
        out_specs=pl.BlockSpec((1, TH, TW), lambda b, h, w: (b, h, w)),
        compiler_params=pltpu.CompilerParams(
            dimension_semantics=("parallel", "parallel", "parallel"),
            vmem_limit_bytes=vmem_limit,
        ),
    )(x)


def _reference(x, start_disp, win_size):
    # pure-JAX reference mirroring the PyTorch forward
    B, D, H, W = x.shape
    if win_size > 0:
        max_d = jnp.argmax(x, axis=1)                             # (B, H, W)
        probs, dvals = [], []
        for d in range(-win_size, win_size + 1):
            idx = jnp.clip(max_d + d, 0, D - 1)                   # (B, H, W)
            prob = jnp.take_along_axis(x, idx[:, None], axis=1)[:, 0]
            probs.append(prob)
            dvals.append(idx.astype(jnp.float32))
        part_x = jnp.stack(probs, axis=1)
        part_x = part_x / (jnp.sum(part_x, axis=1, keepdims=True) + 1e-8)
        part_d = jnp.stack(dvals, axis=1)
        return jnp.sum(part_x * part_d, axis=1) + start_disp
    disp = (jnp.arange(D, dtype=jnp.float32) + start_disp).reshape(1, D, 1, 1)
    return jnp.sum(x * disp, axis=1)


if __name__ == "__main__":
    key = jax.random.PRNGKey(0)
    B, D, H, W = 2, 16, 16, 256          # maxdisp = D = 16; W lane-dense
    start_disp = 2
    win_size = 2

    logits = jax.random.normal(key, (B, D, H, W), dtype=jnp.float32)
    x = jax.nn.softmax(logits, axis=1)   # disparity probability volume

    # windowed regression branch (win_size > 0)
    out_win = jax.block_until_ready(
        disparity_regression(x, start_disp=start_disp, maxdisp=D, win_size=win_size))
    ref_win = _reference(x, start_disp, win_size)
    assert out_win.shape == (B, H, W)
    assert jnp.allclose(out_win, ref_win, atol=1e-4, rtol=1e-4)

    # full soft-argmax branch (win_size == 0)
    out_full = jax.block_until_ready(
        disparity_regression(x, start_disp=start_disp, maxdisp=D, win_size=0))
    ref_full = _reference(x, start_disp, 0)
    assert out_full.shape == (B, H, W)
    assert jnp.allclose(out_full, ref_full, atol=1e-4, rtol=1e-4)

    # bfloat16 probability volume (halves HBM traffic; f32 accumulation in-kernel)
    # Note: argmax tie-breaking is first-occurrence in both kernel and reference.
    x_bf16 = x.astype(jnp.bfloat16)
    out_bf16 = jax.block_until_ready(
        disparity_regression(x_bf16, start_disp=start_disp, maxdisp=D,
                             win_size=win_size))
    ref_bf16 = _reference(x_bf16.astype(jnp.float32), start_disp, win_size)
    assert jnp.allclose(out_bf16, ref_bf16, atol=5e-3, rtol=5e-3)

    print("KERNEL_OK")
</pallas_src>

<mosaic_0001>
module attributes {stable_mosaic.version = 11 : i64} {
  func.func @_disparity_regression_kernel(%arg0: i32, %arg1: i32, %arg2: i32, %arg3: memref<1x16x16x256xf32, #tpu.memory_space<vmem>>, %arg4: memref<1x16x256xf32, #tpu.memory_space<vmem>>) attributes {dimension_semantics = [#tpu.dimension_semantics<parallel>, #tpu.dimension_semantics<parallel>, #tpu.dimension_semantics<parallel>], iteration_bounds = array<i64: 2, 1, 1>, scalar_prefetch = 0 : i64, scratch_operands = 0 : i64, tpu.core_type = #tpu.core_type<tc>, window_params = [{transform_indices = @transform_0, window_bounds = array<i64: 1, 16, 16, 256>}, {transform_indices = @transform_1, window_bounds = array<i64: 1, 16, 256>}]} {
    %c0_i32 = arith.constant 0 : i32
    %c2_i32 = arith.constant 2 : i32
    %0 = arith.addi %c0_i32, %c2_i32 : i32
    %c1_i32 = arith.constant 1 : i32
    scf.for %arg5 = %c0_i32 to %0 step %c1_i32  : i32 {
      %c1_i32_1 = arith.constant 1 : i32
      %1 = arith.muli %arg5, %c1_i32_1 : i32
      %c0_i32_2 = arith.constant 0 : i32
      %2 = arith.addi %c0_i32_2, %1 : i32
      %c8_i32 = arith.constant 8 : i32
      %3 = arith.muli %2, %c8_i32 : i32
      %4 = tpu.assume_multiple %3, 8 : i32
      %c0_i32_3 = arith.constant 0 : i32
      %c1_i32_4 = arith.constant 1 : i32
      %5 = arith.muli %c0_i32_3, %c1_i32_4 : i32
      %c0_i32_5 = arith.constant 0 : i32
      %6 = arith.addi %c0_i32_5, %5 : i32
      %c256_i32 = arith.constant 256 : i32
      %7 = arith.muli %6, %c256_i32 : i32
      %8 = tpu.assume_multiple %7, 256 : i32
      %c0 = arith.constant 0 : index
      %c0_6 = arith.constant 0 : index
      %9 = arith.index_cast %4 : i32 to index
      %10 = arith.index_cast %8 : i32 to index
      %11 = vector.load %arg3[%c0, %c0_6, %9, %10] : memref<1x16x16x256xf32, #tpu.memory_space<vmem>>, vector<1x1x8x256xf32>
      %12 = vector.shape_cast %11 : vector<1x1x8x256xf32> to vector<8x256xf32>
      %c0_i32_7 = arith.constant 0 : i32
      %13 = vector.broadcast %c0_i32_7 : i32 to vector<8x256xi32>
      %c1_i32_8 = arith.constant 1 : i32
      %c0_9 = arith.constant 0 : index
      %14 = arith.index_cast %c1_i32_8 : i32 to index
      %15 = arith.index_cast %4 : i32 to index
      %16 = arith.index_cast %8 : i32 to index
      %17 = vector.load %arg3[%c0_9, %14, %15, %16] : memref<1x16x16x256xf32, #tpu.memory_space<vmem>>, vector<1x1x8x256xf32>
      %18 = vector.shape_cast %17 : vector<1x1x8x256xf32> to vector<8x256xf32>
      %19 = arith.cmpf ogt, %18, %12 : vector<8x256xf32>
      %20 = arith.select %19, %18, %12 : vector<8x256xi1>, vector<8x256xf32>
      %21 = vector.broadcast %c1_i32_8 : i32 to vector<8x256xi32>
      %22 = arith.select %19, %21, %13 : vector<8x256xi1>, vector<8x256xi32>
      %c2_i32_10 = arith.constant 2 : i32
      %c0_11 = arith.constant 0 : index
      %23 = arith.index_cast %c2_i32_10 : i32 to index
      %24 = arith.index_cast %4 : i32 to index
      %25 = arith.index_cast %8 : i32 to index
      %26 = vector.load %arg3[%c0_11, %23, %24, %25] : memref<1x16x16x256xf32, #tpu.memory_space<vmem>>, vector<1x1x8x256xf32>
      %27 = vector.shape_cast %26 : vector<1x1x8x256xf32> to vector<8x256xf32>
      %28 = arith.cmpf ogt, %27, %20 : vector<8x256xf32>
      %29 = arith.select %28, %27, %20 : vector<8x256xi1>, vector<8x256xf32>
      %30 = vector.broadcast %c2_i32_10 : i32 to vector<8x256xi32>
      %31 = arith.select %28, %30, %22 : vector<8x256xi1>, vector<8x256xi32>
      %c3_i32 = arith.constant 3 : i32
      %c0_12 = arith.constant 0 : index
      %32 = arith.index_cast %c3_i32 : i32 to index
      %33 = arith.index_cast %4 : i32 to index
      %34 = arith.index_cast %8 : i32 to index
      %35 = vector.load %arg3[%c0_12, %32, %33, %34] : memref<1x16x16x256xf32, #tpu.memory_space<vmem>>, vector<1x1x8x256xf32>
      %36 = vector.shape_cast %35 : vector<1x1x8x256xf32> to vector<8x256xf32>
      %37 = arith.cmpf ogt, %36, %29 : vector<8x256xf32>
      %38 = arith.select %37, %36, %29 : vector<8x256xi1>, vector<8x256xf32>
      %39 = vector.broadcast %c3_i32 : i32 to vector<8x256xi32>
      %40 = arith.select %37, %39, %31 : vector<8x256xi1>, vector<8x256xi32>
      %c4_i32 = arith.constant 4 : i32
      %c0_13 = arith.constant 0 : index
      %41 = arith.index_cast %c4_i32 : i32 to index
      %42 = arith.index_cast %4 : i32 to index
      %43 = arith.index_cast %8 : i32 to index
      %44 = vector.load %arg3[%c0_13, %41, %42, %43] : memref<1x16x16x256xf32, #tpu.memory_space<vmem>>, vector<1x1x8x256xf32>
      %45 = vector.shape_cast %44 : vector<1x1x8x256xf32> to vector<8x256xf32>
      %46 = arith.cmpf ogt, %45, %38 : vector<8x256xf32>
      %47 = arith.select %46, %45, %38 : vector<8x256xi1>, vector<8x256xf32>
      %48 = vector.broadcast %c4_i32 : i32 to vector<8x256xi32>
      %49 = arith.select %46, %48, %40 : vector<8x256xi1>, vector<8x256xi32>
      %c5_i32 = arith.constant 5 : i32
      %c0_14 = arith.constant 0 : index
      %50 = arith.index_cast %c5_i32 : i32 to index
      %51 = arith.index_cast %4 : i32 to index
      %52 = arith.index_cast %8 : i32 to index
      %53 = vector.load %arg3[%c0_14, %50, %51, %52] : memref<1x16x16x256xf32, #tpu.memory_space<vmem>>, vector<1x1x8x256xf32>
      %54 = vector.shape_cast %53 : vector<1x1x8x256xf32> to vector<8x256xf32>
      %55 = arith.cmpf ogt, %54, %47 : vector<8x256xf32>
      %56 = arith.select %55, %54, %47 : vector<8x256xi1>, vector<8x256xf32>
      %57 = vector.broadcast %c5_i32 : i32 to vector<8x256xi32>
      %58 = arith.select %55, %57, %49 : vector<8x256xi1>, vector<8x256xi32>
      %c6_i32 = arith.constant 6 : i32
      %c0_15 = arith.constant 0 : index
      %59 = arith.index_cast %c6_i32 : i32 to index
      %60 = arith.index_cast %4 : i32 to index
      %61 = arith.index_cast %8 : i32 to index
      %62 = vector.load %arg3[%c0_15, %59, %60, %61] : memref<1x16x16x256xf32, #tpu.memory_space<vmem>>, vector<1x1x8x256xf32>
      %63 = vector.shape_cast %62 : vector<1x1x8x256xf32> to vector<8x256xf32>
      %64 = arith.cmpf ogt, %63, %56 : vector<8x256xf32>
      %65 = arith.select %64, %63, %56 : vector<8x256xi1>, vector<8x256xf32>
      %66 = vector.broadcast %c6_i32 : i32 to vector<8x256xi32>
      %67 = arith.select %64, %66, %58 : vector<8x256xi1>, vector<8x256xi32>
      %c7_i32 = arith.constant 7 : i32
      %c0_16 = arith.constant 0 : index
      %68 = arith.index_cast %c7_i32 : i32 to index
      %69 = arith.index_cast %4 : i32 to index
      %70 = arith.index_cast %8 : i32 to index
      %71 = vector.load %arg3[%c0_16, %68, %69, %70] : memref<1x16x16x256xf32, #tpu.memory_space<vmem>>, vector<1x1x8x256xf32>
      %72 = vector.shape_cast %71 : vector<1x1x8x256xf32> to vector<8x256xf32>
      %73 = arith.cmpf ogt, %72, %65 : vector<8x256xf32>
      %74 = arith.select %73, %72, %65 : vector<8x256xi1>, vector<8x256xf32>
      %75 = vector.broadcast %c7_i32 : i32 to vector<8x256xi32>
      %76 = arith.select %73, %75, %67 : vector<8x256xi1>, vector<8x256xi32>
      %c8_i32_17 = arith.constant 8 : i32
      %c0_18 = arith.constant 0 : index
      %77 = arith.index_cast %c8_i32_17 : i32 to index
      %78 = arith.index_cast %4 : i32 to index
      %79 = arith.index_cast %8 : i32 to index
      %80 = vector.load %arg3[%c0_18, %77, %78, %79] : memref<1x16x16x256xf32, #tpu.memory_space<vmem>>, vector<1x1x8x256xf32>
      %81 = vector.shape_cast %80 : vector<1x1x8x256xf32> to vector<8x256xf32>
      %82 = arith.cmpf ogt, %81, %74 : vector<8x256xf32>
      %83 = arith.select %82, %81, %74 : vector<8x256xi1>, vector<8x256xf32>
      %84 = vector.broadcast %c8_i32_17 : i32 to vector<8x256xi32>
      %85 = arith.select %82, %84, %76 : vector<8x256xi1>, vector<8x256xi32>
      %c9_i32 = arith.constant 9 : i32
      %c0_19 = arith.constant 0 : index
      %86 = arith.index_cast %c9_i32 : i32 to index
      %87 = arith.index_cast %4 : i32 to index
      %88 = arith.index_cast %8 : i32 to index
      %89 = vector.load %arg3[%c0_19, %86, %87, %88] : memref<1x16x16x256xf32, #tpu.memory_space<vmem>>, vector<1x1x8x256xf32>
      %90 = vector.shape_cast %89 : vector<1x1x8x256xf32> to vector<8x256xf32>
      %91 = arith.cmpf ogt, %90, %83 : vector<8x256xf32>
      %92 = arith.select %91, %90, %83 : vector<8x256xi1>, vector<8x256xf32>
      %93 = vector.broadcast %c9_i32 : i32 to vector<8x256xi32>
      %94 = arith.select %91, %93, %85 : vector<8x256xi1>, vector<8x256xi32>
      %c10_i32 = arith.constant 10 : i32
      %c0_20 = arith.constant 0 : index
      %95 = arith.index_cast %c10_i32 : i32 to index
      %96 = arith.index_cast %4 : i32 to index
      %97 = arith.index_cast %8 : i32 to index
      %98 = vector.load %arg3[%c0_20, %95, %96, %97] : memref<1x16x16x256xf32, #tpu.memory_space<vmem>>, vector<1x1x8x256xf32>
      %99 = vector.shape_cast %98 : vector<1x1x8x256xf32> to vector<8x256xf32>
      %100 = arith.cmpf ogt, %99, %92 : vector<8x256xf32>
      %101 = arith.select %100, %99, %92 : vector<8x256xi1>, vector<8x256xf32>
      %102 = vector.broadcast %c10_i32 : i32 to vector<8x256xi32>
      %103 = arith.select %100, %102, %94 : vector<8x256xi1>, vector<8x256xi32>
      %c11_i32 = arith.constant 11 : i32
      %c0_21 = arith.constant 0 : index
      %104 = arith.index_cast %c11_i32 : i32 to index
      %105 = arith.index_cast %4 : i32 to index
      %106 = arith.index_cast %8 : i32 to index
      %107 = vector.load %arg3[%c0_21, %104, %105, %106] : memref<1x16x16x256xf32, #tpu.memory_space<vmem>>, vector<1x1x8x256xf32>
      %108 = vector.shape_cast %107 : vector<1x1x8x256xf32> to vector<8x256xf32>
      %109 = arith.cmpf ogt, %108, %101 : vector<8x256xf32>
      %110 = arith.select %109, %108, %101 : vector<8x256xi1>, vector<8x256xf32>
      %111 = vector.broadcast %c11_i32 : i32 to vector<8x256xi32>
      %112 = arith.select %109, %111, %103 : vector<8x256xi1>, vector<8x256xi32>
      %c12_i32 = arith.constant 12 : i32
      %c0_22 = arith.constant 0 : index
      %113 = arith.index_cast %c12_i32 : i32 to index
      %114 = arith.index_cast %4 : i32 to index
      %115 = arith.index_cast %8 : i32 to index
      %116 = vector.load %arg3[%c0_22, %113, %114, %115] : memref<1x16x16x256xf32, #tpu.memory_space<vmem>>, vector<1x1x8x256xf32>
      %117 = vector.shape_cast %116 : vector<1x1x8x256xf32> to vector<8x256xf32>
      %118 = arith.cmpf ogt, %117, %110 : vector<8x256xf32>
      %119 = arith.select %118, %117, %110 : vector<8x256xi1>, vector<8x256xf32>
      %120 = vector.broadcast %c12_i32 : i32 to vector<8x256xi32>
      %121 = arith.select %118, %120, %112 : vector<8x256xi1>, vector<8x256xi32>
      %c13_i32 = arith.constant 13 : i32
      %c0_23 = arith.constant 0 : index
      %122 = arith.index_cast %c13_i32 : i32 to index
      %123 = arith.index_cast %4 : i32 to index
      %124 = arith.index_cast %8 : i32 to index
      %125 = vector.load %arg3[%c0_23, %122, %123, %124] : memref<1x16x16x256xf32, #tpu.memory_space<vmem>>, vector<1x1x8x256xf32>
      %126 = vector.shape_cast %125 : vector<1x1x8x256xf32> to vector<8x256xf32>
      %127 = arith.cmpf ogt, %126, %119 : vector<8x256xf32>
      %128 = arith.select %127, %126, %119 : vector<8x256xi1>, vector<8x256xf32>
      %129 = vector.broadcast %c13_i32 : i32 to vector<8x256xi32>
      %130 = arith.select %127, %129, %121 : vector<8x256xi1>, vector<8x256xi32>
      %c14_i32 = arith.constant 14 : i32
      %c0_24 = arith.constant 0 : index
      %131 = arith.index_cast %c14_i32 : i32 to index
      %132 = arith.index_cast %4 : i32 to index
      %133 = arith.index_cast %8 : i32 to index
      %134 = vector.load %arg3[%c0_24, %131, %132, %133] : memref<1x16x16x256xf32, #tpu.memory_space<vmem>>, vector<1x1x8x256xf32>
      %135 = vector.shape_cast %134 : vector<1x1x8x256xf32> to vector<8x256xf32>
      %136 = arith.cmpf ogt, %135, %128 : vector<8x256xf32>
      %137 = arith.select %136, %135, %128 : vector<8x256xi1>, vector<8x256xf32>
      %138 = vector.broadcast %c14_i32 : i32 to vector<8x256xi32>
      %139 = arith.select %136, %138, %130 : vector<8x256xi1>, vector<8x256xi32>
      %c15_i32 = arith.constant 15 : i32
      %c0_25 = arith.constant 0 : index
      %140 = arith.index_cast %c15_i32 : i32 to index
      %141 = arith.index_cast %4 : i32 to index
      %142 = arith.index_cast %8 : i32 to index
      %143 = vector.load %arg3[%c0_25, %140, %141, %142] : memref<1x16x16x256xf32, #tpu.memory_space<vmem>>, vector<1x1x8x256xf32>
      %144 = vector.shape_cast %143 : vector<1x1x8x256xf32> to vector<8x256xf32>
      %145 = arith.cmpf ogt, %144, %137 : vector<8x256xf32>
      %146 = arith.select %145, %144, %137 : vector<8x256xi1>, vector<8x256xf32>
      %147 = vector.broadcast %c15_i32 : i32 to vector<8x256xi32>
      %148 = arith.select %145, %147, %139 : vector<8x256xi1>, vector<8x256xi32>
      %c15_i32_26 = arith.constant 15 : i32
      %c3_i32_27 = arith.constant 3 : i32
      %149 = vector.broadcast %c3_i32_27 : i32 to vector<8x256xi32>
      %150 = arith.subi %149, %148 : vector<8x256xi32>
      %c0_i32_28 = arith.constant 0 : i32
      %151 = vector.broadcast %c0_i32_28 : i32 to vector<8x256xi32>
      %152 = arith.maxsi %151, %150 : vector<8x256xi32>
      %153 = arith.sitofp %152 : vector<8x256xi32> to vector<8x256xf32>
      %c-12_i32 = arith.constant -12 : i32
      %154 = vector.broadcast %c-12_i32 : i32 to vector<8x256xi32>
      %155 = arith.addi %148, %154 : vector<8x256xi32>
      %c0_i32_29 = arith.constant 0 : i32
      %156 = vector.broadcast %c0_i32_29 : i32 to vector<8x256xi32>
      %157 = arith.maxsi %156, %155 : vector<8x256xi32>
      %158 = arith.sitofp %157 : vector<8x256xi32> to vector<8x256xf32>
      %c0_30 = arith.constant 0 : index
      %c0_31 = arith.constant 0 : index
      %159 = arith.index_cast %4 : i32 to index
      %160 = arith.index_cast %8 : i32 to index
      %161 = vector.load %arg3[%c0_30, %c0_31, %159, %160] : memref<1x16x16x256xf32, #tpu.memory_space<vmem>>, vector<1x1x8x256xf32>
      %162 = vector.shape_cast %161 : vector<1x1x8x256xf32> to vector<8x256xf32>
      %c0_32 = arith.constant 0 : index
      %c15 = arith.constant 15 : index
      %163 = arith.index_cast %4 : i32 to index
      %164 = arith.index_cast %8 : i32 to index
      %165 = vector.load %arg3[%c0_32, %c15, %163, %164] : memref<1x16x16x256xf32, #tpu.memory_space<vmem>>, vector<1x1x8x256xf32>
      %166 = vector.shape_cast %165 : vector<1x1x8x256xf32> to vector<8x256xf32>
      %167 = arith.mulf %153, %162 : vector<8x256xf32>
      %168 = arith.mulf %158, %166 : vector<8x256xf32>
      %169 = arith.addf %167, %168 : vector<8x256xf32>
      %170 = arith.mulf %158, %166 : vector<8x256xf32>
      %cst = arith.constant 1.500000e+01 : f32
      %171 = vector.broadcast %cst : f32 to vector<8x256xf32>
      %172 = arith.mulf %170, %171 : vector<8x256xf32>
      %c2_i32_33 = arith.constant 2 : i32
      %173 = vector.broadcast %c2_i32_33 : i32 to vector<8x256xi32>
      %174 = arith.subi %148, %173 : vector<8x256xi32>
      %c4_i32_34 = arith.constant 4 : i32
      %c1_i32_35 = arith.constant 1 : i32
      %c0_36 = arith.constant 0 : index
      %175 = arith.index_cast %c1_i32_35 : i32 to index
      %176 = arith.index_cast %4 : i32 to index
      %177 = arith.index_cast %8 : i32 to index
      %178 = vector.load %arg3[%c0_36, %175, %176, %177] : memref<1x16x16x256xf32, #tpu.memory_space<vmem>>, vector<1x1x8x256xf32>
      %179 = vector.shape_cast %178 : vector<1x1x8x256xf32> to vector<8x256xf32>
      %180 = vector.broadcast %c1_i32_35 : i32 to vector<8x256xi32>
      %181 = arith.subi %180, %174 : vector<8x256xi32>
      %182 = tpu.bitcast %181 : vector<8x256xi32> -> vector<8x256xi32>
      %183 = vector.broadcast %c4_i32_34 : i32 to vector<8x256xi32>
      %184 = arith.cmpi ule, %182, %183 : vector<8x256xi32>
      %cst_37 = arith.constant 0.000000e+00 : f32
      %185 = vector.broadcast %cst_37 : f32 to vector<8x256xf32>
      %186 = arith.select %184, %179, %185 : vector<8x256xi1>, vector<8x256xf32>
      %187 = arith.sitofp %c1_i32_35 : i32 to f32
      %188 = vector.broadcast %187 : f32 to vector<8x256xf32>
      %189 = arith.mulf %186, %188 : vector<8x256xf32>
      %190 = arith.addf %172, %189 : vector<8x256xf32>
      %191 = arith.addf %169, %186 : vector<8x256xf32>
      %c2_i32_38 = arith.constant 2 : i32
      %c0_39 = arith.constant 0 : index
      %192 = arith.index_cast %c2_i32_38 : i32 to index
      %193 = arith.index_cast %4 : i32 to index
      %194 = arith.index_cast %8 : i32 to index
      %195 = vector.load %arg3[%c0_39, %192, %193, %194] : memref<1x16x16x256xf32, #tpu.memory_space<vmem>>, vector<1x1x8x256xf32>
      %196 = vector.shape_cast %195 : vector<1x1x8x256xf32> to vector<8x256xf32>
      %197 = vector.broadcast %c2_i32_38 : i32 to vector<8x256xi32>
      %198 = arith.subi %197, %174 : vector<8x256xi32>
      %199 = tpu.bitcast %198 : vector<8x256xi32> -> vector<8x256xi32>
      %200 = vector.broadcast %c4_i32_34 : i32 to vector<8x256xi32>
      %201 = arith.cmpi ule, %199, %200 : vector<8x256xi32>
      %cst_40 = arith.constant 0.000000e+00 : f32
      %202 = vector.broadcast %cst_40 : f32 to vector<8x256xf32>
      %203 = arith.select %201, %196, %202 : vector<8x256xi1>, vector<8x256xf32>
      %204 = arith.sitofp %c2_i32_38 : i32 to f32
      %205 = vector.broadcast %204 : f32 to vector<8x256xf32>
      %206 = arith.mulf %203, %205 : vector<8x256xf32>
      %207 = arith.addf %190, %206 : vector<8x256xf32>
      %208 = arith.addf %191, %203 : vector<8x256xf32>
      %c3_i32_41 = arith.constant 3 : i32
      %c0_42 = arith.constant 0 : index
      %209 = arith.index_cast %c3_i32_41 : i32 to index
      %210 = arith.index_cast %4 : i32 to index
      %211 = arith.index_cast %8 : i32 to index
      %212 = vector.load %arg3[%c0_42, %209, %210, %211] : memref<1x16x16x256xf32, #tpu.memory_space<vmem>>, vector<1x1x8x256xf32>
      %213 = vector.shape_cast %212 : vector<1x1x8x256xf32> to vector<8x256xf32>
      %214 = vector.broadcast %c3_i32_41 : i32 to vector<8x256xi32>
      %215 = arith.subi %214, %174 : vector<8x256xi32>
      %216 = tpu.bitcast %215 : vector<8x256xi32> -> vector<8x256xi32>
      %217 = vector.broadcast %c4_i32_34 : i32 to vector<8x256xi32>
      %218 = arith.cmpi ule, %216, %217 : vector<8x256xi32>
      %cst_43 = arith.constant 0.000000e+00 : f32
      %219 = vector.broadcast %cst_43 : f32 to vector<8x256xf32>
      %220 = arith.select %218, %213, %219 : vector<8x256xi1>, vector<8x256xf32>
      %221 = arith.sitofp %c3_i32_41 : i32 to f32
      %222 = vector.broadcast %221 : f32 to vector<8x256xf32>
      %223 = arith.mulf %220, %222 : vector<8x256xf32>
      %224 = arith.addf %207, %223 : vector<8x256xf32>
      %225 = arith.addf %208, %220 : vector<8x256xf32>
      %c4_i32_44 = arith.constant 4 : i32
      %c0_45 = arith.constant 0 : index
      %226 = arith.index_cast %c4_i32_44 : i32 to index
      %227 = arith.index_cast %4 : i32 to index
      %228 = arith.index_cast %8 : i32 to index
      %229 = vector.load %arg3[%c0_45, %226, %227, %228] : memref<1x16x16x256xf32, #tpu.memory_space<vmem>>, vector<1x1x8x256xf32>
      %230 = vector.shape_cast %229 : vector<1x1x8x256xf32> to vector<8x256xf32>
      %231 = vector.broadcast %c4_i32_44 : i32 to vector<8x256xi32>
      %232 = arith.subi %231, %174 : vector<8x256xi32>
      %233 = tpu.bitcast %232 : vector<8x256xi32> -> vector<8x256xi32>
      %234 = vector.broadcast %c4_i32_34 : i32 to vector<8x256xi32>
      %235 = arith.cmpi ule, %233, %234 : vector<8x256xi32>
      %cst_46 = arith.constant 0.000000e+00 : f32
      %236 = vector.broadcast %cst_46 : f32 to vector<8x256xf32>
      %237 = arith.select %235, %230, %236 : vector<8x256xi1>, vector<8x256xf32>
      %238 = arith.sitofp %c4_i32_44 : i32 to f32
      %239 = vector.broadcast %238 : f32 to vector<8x256xf32>
      %240 = arith.mulf %237, %239 : vector<8x256xf32>
      %241 = arith.addf %224, %240 : vector<8x256xf32>
      %242 = arith.addf %225, %237 : vector<8x256xf32>
      %c5_i32_47 = arith.constant 5 : i32
      %c0_48 = arith.constant 0 : index
      %243 = arith.index_cast %c5_i32_47 : i32 to index
      %244 = arith.index_cast %4 : i32 to index
      %245 = arith.index_cast %8 : i32 to index
      %246 = vector.load %arg3[%c0_48, %243, %244, %245] : memref<1x16x16x256xf32, #tpu.memory_space<vmem>>, vector<1x1x8x256xf32>
      %247 = vector.shape_cast %246 : vector<1x1x8x256xf32> to vector<8x256xf32>
      %248 = vector.broadcast %c5_i32_47 : i32 to vector<8x256xi32>
      %249 = arith.subi %248, %174 : vector<8x256xi32>
      %250 = tpu.bitcast %249 : vector<8x256xi32> -> vector<8x256xi32>
      %251 = vector.broadcast %c4_i32_34 : i32 to vector<8x256xi32>
      %252 = arith.cmpi ule, %250, %251 : vector<8x256xi32>
      %cst_49 = arith.constant 0.000000e+00 : f32
      %253 = vector.broadcast %cst_49 : f32 to vector<8x256xf32>
      %254 = arith.select %252, %247, %253 : vector<8x256xi1>, vector<8x256xf32>
      %255 = arith.sitofp %c5_i32_47 : i32 to f32
      %256 = vector.broadcast %255 : f32 to vector<8x256xf32>
      %257 = arith.mulf %254, %256 : vector<8x256xf32>
      %258 = arith.addf %241, %257 : vector<8x256xf32>
      %259 = arith.addf %242, %254 : vector<8x256xf32>
      %c6_i32_50 = arith.constant 6 : i32
      %c0_51 = arith.constant 0 : index
      %260 = arith.index_cast %c6_i32_50 : i32 to index
      %261 = arith.index_cast %4 : i32 to index
      %262 = arith.index_cast %8 : i32 to index
      %263 = vector.load %arg3[%c0_51, %260, %261, %262] : memref<1x16x16x256xf32, #tpu.memory_space<vmem>>, vector<1x1x8x256xf32>
      %264 = vector.shape_cast %263 : vector<1x1x8x256xf32> to vector<8x256xf32>
      %265 = vector.broadcast %c6_i32_50 : i32 to vector<8x256xi32>
      %266 = arith.subi %265, %174 : vector<8x256xi32>
      %267 = tpu.bitcast %266 : vector<8x256xi32> -> vector<8x256xi32>
      %268 = vector.broadcast %c4_i32_34 : i32 to vector<8x256xi32>
      %269 = arith.cmpi ule, %267, %268 : vector<8x256xi32>
      %cst_52 = arith.constant 0.000000e+00 : f32
      %270 = vector.broadcast %cst_52 : f32 to vector<8x256xf32>
      %271 = arith.select %269, %264, %270 : vector<8x256xi1>, vector<8x256xf32>
      %272 = arith.sitofp %c6_i32_50 : i32 to f32
      %273 = vector.broadcast %272 : f32 to vector<8x256xf32>
      %274 = arith.mulf %271, %273 : vector<8x256xf32>
      %275 = arith.addf %258, %274 : vector<8x256xf32>
      %276 = arith.addf %259, %271 : vector<8x256xf32>
      %c7_i32_53 = arith.constant 7 : i32
      %c0_54 = arith.constant 0 : index
      %277 = arith.index_cast %c7_i32_53 : i32 to index
      %278 = arith.index_cast %4 : i32 to index
      %279 = arith.index_cast %8 : i32 to index
      %280 = vector.load %arg3[%c0_54, %277, %278, %279] : memref<1x16x16x256xf32, #tpu.memory_space<vmem>>, vector<1x1x8x256xf32>
      %281 = vector.shape_cast %280 : vector<1x1x8x256xf32> to vector<8x256xf32>
      %282 = vector.broadcast %c7_i32_53 : i32 to vector<8x256xi32>
      %283 = arith.subi %282, %174 : vector<8x256xi32>
      %284 = tpu.bitcast %283 : vector<8x256xi32> -> vector<8x256xi32>
      %285 = vector.broadcast %c4_i32_34 : i32 to vector<8x256xi32>
      %286 = arith.cmpi ule, %284, %285 : vector<8x256xi32>
      %cst_55 = arith.constant 0.000000e+00 : f32
      %287 = vector.broadcast %cst_55 : f32 to vector<8x256xf32>
      %288 = arith.select %286, %281, %287 : vector<8x256xi1>, vector<8x256xf32>
      %289 = arith.sitofp %c7_i32_53 : i32 to f32
      %290 = vector.broadcast %289 : f32 to vector<8x256xf32>
      %291 = arith.mulf %288, %290 : vector<8x256xf32>
      %292 = arith.addf %275, %291 : vector<8x256xf32>
      %293 = arith.addf %276, %288 : vector<8x256xf32>
      %c8_i32_56 = arith.constant 8 : i32
      %c0_57 = arith.constant 0 : index
      %294 = arith.index_cast %c8_i32_56 : i32 to index
      %295 = arith.index_cast %4 : i32 to index
      %296 = arith.index_cast %8 : i32 to index
      %297 = vector.load %arg3[%c0_57, %294, %295, %296] : memref<1x16x16x256xf32, #tpu.memory_space<vmem>>, vector<1x1x8x256xf32>
      %298 = vector.shape_cast %297 : vector<1x1x8x256xf32> to vector<8x256xf32>
      %299 = vector.broadcast %c8_i32_56 : i32 to vector<8x256xi32>
      %300 = arith.subi %299, %174 : vector<8x256xi32>
      %301 = tpu.bitcast %300 : vector<8x256xi32> -> vector<8x256xi32>
      %302 = vector.broadcast %c4_i32_34 : i32 to vector<8x256xi32>
      %303 = arith.cmpi ule, %301, %302 : vector<8x256xi32>
      %cst_58 = arith.constant 0.000000e+00 : f32
      %304 = vector.broadcast %cst_58 : f32 to vector<8x256xf32>
      %305 = arith.select %303, %298, %304 : vector<8x256xi1>, vector<8x256xf32>
      %306 = arith.sitofp %c8_i32_56 : i32 to f32
      %307 = vector.broadcast %306 : f32 to vector<8x256xf32>
      %308 = arith.mulf %305, %307 : vector<8x256xf32>
      %309 = arith.addf %292, %308 : vector<8x256xf32>
      %310 = arith.addf %293, %305 : vector<8x256xf32>
      %c9_i32_59 = arith.constant 9 : i32
      %c0_60 = arith.constant 0 : index
      %311 = arith.index_cast %c9_i32_59 : i32 to index
      %312 = arith.index_cast %4 : i32 to index
      %313 = arith.index_cast %8 : i32 to index
      %314 = vector.load %arg3[%c0_60, %311, %312, %313] : memref<1x16x16x256xf32, #tpu.memory_space<vmem>>, vector<1x1x8x256xf32>
      %315 = vector.shape_cast %314 : vector<1x1x8x256xf32> to vector<8x256xf32>
      %316 = vector.broadcast %c9_i32_59 : i32 to vector<8x256xi32>
      %317 = arith.subi %316, %174 : vector<8x256xi32>
      %318 = tpu.bitcast %317 : vector<8x256xi32> -> vector<8x256xi32>
      %319 = vector.broadcast %c4_i32_34 : i32 to vector<8x256xi32>
      %320 = arith.cmpi ule, %318, %319 : vector<8x256xi32>
      %cst_61 = arith.constant 0.000000e+00 : f32
      %321 = vector.broadcast %cst_61 : f32 to vector<8x256xf32>
      %322 = arith.select %320, %315, %321 : vector<8x256xi1>, vector<8x256xf32>
      %323 = arith.sitofp %c9_i32_59 : i32 to f32
      %324 = vector.broadcast %323 : f32 to vector<8x256xf32>
      %325 = arith.mulf %322, %324 : vector<8x256xf32>
      %326 = arith.addf %309, %325 : vector<8x256xf32>
      %327 = arith.addf %310, %322 : vector<8x256xf32>
      %c10_i32_62 = arith.constant 10 : i32
      %c0_63 = arith.constant 0 : index
      %328 = arith.index_cast %c10_i32_62 : i32 to index
      %329 = arith.index_cast %4 : i32 to index
      %330 = arith.index_cast %8 : i32 to index
      %331 = vector.load %arg3[%c0_63, %328, %329, %330] : memref<1x16x16x256xf32, #tpu.memory_space<vmem>>, vector<1x1x8x256xf32>
      %332 = vector.shape_cast %331 : vector<1x1x8x256xf32> to vector<8x256xf32>
      %333 = vector.broadcast %c10_i32_62 : i32 to vector<8x256xi32>
      %334 = arith.subi %333, %174 : vector<8x256xi32>
      %335 = tpu.bitcast %334 : vector<8x256xi32> -> vector<8x256xi32>
      %336 = vector.broadcast %c4_i32_34 : i32 to vector<8x256xi32>
      %337 = arith.cmpi ule, %335, %336 : vector<8x256xi32>
      %cst_64 = arith.constant 0.000000e+00 : f32
      %338 = vector.broadcast %cst_64 : f32 to vector<8x256xf32>
      %339 = arith.select %337, %332, %338 : vector<8x256xi1>, vector<8x256xf32>
      %340 = arith.sitofp %c10_i32_62 : i32 to f32
      %341 = vector.broadcast %340 : f32 to vector<8x256xf32>
      %342 = arith.mulf %339, %341 : vector<8x256xf32>
      %343 = arith.addf %326, %342 : vector<8x256xf32>
      %344 = arith.addf %327, %339 : vector<8x256xf32>
      %c11_i32_65 = arith.constant 11 : i32
      %c0_66 = arith.constant 0 : index
      %345 = arith.index_cast %c11_i32_65 : i32 to index
      %346 = arith.index_cast %4 : i32 to index
      %347 = arith.index_cast %8 : i32 to index
      %348 = vector.load %arg3[%c0_66, %345, %346, %347] : memref<1x16x16x256xf32, #tpu.memory_space<vmem>>, vector<1x1x8x256xf32>
      %349 = vector.shape_cast %348 : vector<1x1x8x256xf32> to vector<8x256xf32>
      %350 = vector.broadcast %c11_i32_65 : i32 to vector<8x256xi32>
      %351 = arith.subi %350, %174 : vector<8x256xi32>
      %352 = tpu.bitcast %351 : vector<8x256xi32> -> vector<8x256xi32>
      %353 = vector.broadcast %c4_i32_34 : i32 to vector<8x256xi32>
      %354 = arith.cmpi ule, %352, %353 : vector<8x256xi32>
      %cst_67 = arith.constant 0.000000e+00 : f32
      %355 = vector.broadcast %cst_67 : f32 to vector<8x256xf32>
      %356 = arith.select %354, %349, %355 : vector<8x256xi1>, vector<8x256xf32>
      %357 = arith.sitofp %c11_i32_65 : i32 to f32
      %358 = vector.broadcast %357 : f32 to vector<8x256xf32>
      %359 = arith.mulf %356, %358 : vector<8x256xf32>
      %360 = arith.addf %343, %359 : vector<8x256xf32>
      %361 = arith.addf %344, %356 : vector<8x256xf32>
      %c12_i32_68 = arith.constant 12 : i32
      %c0_69 = arith.constant 0 : index
      %362 = arith.index_cast %c12_i32_68 : i32 to index
      %363 = arith.index_cast %4 : i32 to index
      %364 = arith.index_cast %8 : i32 to index
      %365 = vector.load %arg3[%c0_69, %362, %363, %364] : memref<1x16x16x256xf32, #tpu.memory_space<vmem>>, vector<1x1x8x256xf32>
      %366 = vector.shape_cast %365 : vector<1x1x8x256xf32> to vector<8x256xf32>
      %367 = vector.broadcast %c12_i32_68 : i32 to vector<8x256xi32>
      %368 = arith.subi %367, %174 : vector<8x256xi32>
      %369 = tpu.bitcast %368 : vector<8x256xi32> -> vector<8x256xi32>
      %370 = vector.broadcast %c4_i32_34 : i32 to vector<8x256xi32>
      %371 = arith.cmpi ule, %369, %370 : vector<8x256xi32>
      %cst_70 = arith.constant 0.000000e+00 : f32
      %372 = vector.broadcast %cst_70 : f32 to vector<8x256xf32>
      %373 = arith.select %371, %366, %372 : vector<8x256xi1>, vector<8x256xf32>
      %374 = arith.sitofp %c12_i32_68 : i32 to f32
      %375 = vector.broadcast %374 : f32 to vector<8x256xf32>
      %376 = arith.mulf %373, %375 : vector<8x256xf32>
      %377 = arith.addf %360, %376 : vector<8x256xf32>
      %378 = arith.addf %361, %373 : vector<8x256xf32>
      %c13_i32_71 = arith.constant 13 : i32
      %c0_72 = arith.constant 0 : index
      %379 = arith.index_cast %c13_i32_71 : i32 to index
      %380 = arith.index_cast %4 : i32 to index
      %381 = arith.index_cast %8 : i32 to index
      %382 = vector.load %arg3[%c0_72, %379, %380, %381] : memref<1x16x16x256xf32, #tpu.memory_space<vmem>>, vector<1x1x8x256xf32>
      %383 = vector.shape_cast %382 : vector<1x1x8x256xf32> to vector<8x256xf32>
      %384 = vector.broadcast %c13_i32_71 : i32 to vector<8x256xi32>
      %385 = arith.subi %384, %174 : vector<8x256xi32>
      %386 = tpu.bitcast %385 : vector<8x256xi32> -> vector<8x256xi32>
      %387 = vector.broadcast %c4_i32_34 : i32 to vector<8x256xi32>
      %388 = arith.cmpi ule, %386, %387 : vector<8x256xi32>
      %cst_73 = arith.constant 0.000000e+00 : f32
      %389 = vector.broadcast %cst_73 : f32 to vector<8x256xf32>
      %390 = arith.select %388, %383, %389 : vector<8x256xi1>, vector<8x256xf32>
      %391 = arith.sitofp %c13_i32_71 : i32 to f32
      %392 = vector.broadcast %391 : f32 to vector<8x256xf32>
      %393 = arith.mulf %390, %392 : vector<8x256xf32>
      %394 = arith.addf %377, %393 : vector<8x256xf32>
      %395 = arith.addf %378, %390 : vector<8x256xf32>
      %c14_i32_74 = arith.constant 14 : i32
      %c0_75 = arith.constant 0 : index
      %396 = arith.index_cast %c14_i32_74 : i32 to index
      %397 = arith.index_cast %4 : i32 to index
      %398 = arith.index_cast %8 : i32 to index
      %399 = vector.load %arg3[%c0_75, %396, %397, %398] : memref<1x16x16x256xf32, #tpu.memory_space<vmem>>, vector<1x1x8x256xf32>
      %400 = vector.shape_cast %399 : vector<1x1x8x256xf32> to vector<8x256xf32>
      %401 = vector.broadcast %c14_i32_74 : i32 to vector<8x256xi32>
      %402 = arith.subi %401, %174 : vector<8x256xi32>
      %403 = tpu.bitcast %402 : vector<8x256xi32> -> vector<8x256xi32>
      %404 = vector.broadcast %c4_i32_34 : i32 to vector<8x256xi32>
      %405 = arith.cmpi ule, %403, %404 : vector<8x256xi32>
      %cst_76 = arith.constant 0.000000e+00 : f32
      %406 = vector.broadcast %cst_76 : f32 to vector<8x256xf32>
      %407 = arith.select %405, %400, %406 : vector<8x256xi1>, vector<8x256xf32>
      %408 = arith.sitofp %c14_i32_74 : i32 to f32
      %409 = vector.broadcast %408 : f32 to vector<8x256xf32>
      %410 = arith.mulf %407, %409 : vector<8x256xf32>
      %411 = arith.addf %394, %410 : vector<8x256xf32>
      %412 = arith.addf %395, %407 : vector<8x256xf32>
      %c14_i32_77 = arith.constant 14 : i32
      %cst_78 = arith.constant 9.99999993E-9 : f32
      %413 = vector.broadcast %cst_78 : f32 to vector<8x256xf32>
      %414 = arith.addf %412, %413 : vector<8x256xf32>
      %415 = tpu.reciprocal %414 {approx = true} : vector<8x256xf32> -> vector<8x256xf32>
      %416 = arith.mulf %414, %415 : vector<8x256xf32>
      %cst_79 = arith.constant 2.000000e+00 : f32
      %417 = vector.broadcast %cst_79 : f32 to vector<8x256xf32>
      %418 = arith.subf %417, %416 : vector<8x256xf32>
      %419 = arith.mulf %415, %418 : vector<8x256xf32>
      %420 = arith.mulf %411, %419 : vector<8x256xf32>
      %cst_80 = arith.constant 2.000000e+00 : f32
      %421 = vector.broadcast %cst_80 : f32 to vector<8x256xf32>
      %422 = arith.addf %420, %421 : vector<8x256xf32>
      %c0_81 = arith.constant 0 : index
      %423 = arith.index_cast %4 : i32 to index
      %424 = arith.index_cast %8 : i32 to index
      %425 = vector.load %arg4[%c0_81, %423, %424] : memref<1x16x256xf32, #tpu.memory_space<vmem>>, vector<1x8x256xf32>
      %426 = vector.shape_cast %425 : vector<1x8x256xf32> to vector<8x256xf32>
      %427 = vector.shape_cast %422 : vector<8x256xf32> to vector<1x8x256xf32>
      tpu.vector_store %arg4[%c0_81, %423, %424], %427 {strides = array<i32>} : memref<1x16x256xf32, #tpu.memory_space<vmem>>, vector<1x8x256xf32>,
      %c1_i32_82 = arith.constant 1 : i32
    }
    %c2_i32_0 = arith.constant 2 : i32
    return
  }
  func.func @transform_0(%arg0: i32, %arg1: i32, %arg2: i32) -> (i32, i32, i32, i32) {
    %c0_i32 = arith.constant 0 : i32
    %c0_i32_0 = arith.constant 0 : i32
    return %arg0, %c0_i32, %arg1, %arg2 : i32, i32, i32, i32
  }
  func.func @transform_1(%arg0: i32, %arg1: i32, %arg2: i32) -> (i32, i32, i32) {
    %c0_i32 = arith.constant 0 : i32
    return %arg0, %arg1, %arg2 : i32, i32, i32
  }
}

</mosaic_0001>

<llo_original>
// kernel: tpu_custom_call.1
$region0: #{tpu_custom_call.1}
  #allocation0 [shape = 'u32[]', space=smem, size = 0x4, offset = 0x4, fixed_abs, tag = 'smem constant byte address 0x4 - core index']
  #allocation1 [shape = 'u32[144,128]{1,0:T(1,128)}', space=vmem, size = 0x12000, scoped, tag = 'internal scratch']
  %s0 = inlined_call_operand.hbm [shape: f32[2,16,16,256], index: 0, kind: input, shape index: {}]
  %s1 = inlined_call_operand.hbm [shape: f32[2,16,256], index: 1, kind: output, shape index: {}]
  %s2 = sld [smem:[#allocation0]]
  $region48: #{tpu_custom_call.1} parent=0
    _
  %s4 = ssub.s32 1, %s2
  %s5 = scalar_select 0, %s4, %s2
  $region1: #{tpu_custom_call.1} parent=0
    #allocation2 [shape = 'u8[524288]{0}', space=vmem, size = 0x80000, scoped, tag = 'input window, operand 0']
    #allocation3 [shape = 's32[2]{0}', space=sflag, size = 0x8, scoped, tag = 'scoped memory for tpu_custom_call.1']
    #allocation4 [shape = 's32[2]{0}', space=sflag, size = 0x8, scoped, tag = 'scoped memory for tpu_custom_call.1']
    #allocation5 [shape = 'u8[32768]{0}', space=vmem, size = 0x8000, scoped, tag = 'output window, operand 0']
    %6 = vsyncpa [#allocation3], 0
    %s7 = scalar_lea.sflag [#allocation3], 1
    %8 = vsyncpa %s7, 0
    %9 = vsyncpa [#allocation4], 0
    %s10 = scalar_lea.sflag [#allocation4], 1
    %11 = vsyncpa %s10, 0
    loop: start=0, step=1, limit=4
    $region2: #{tpu_custom_call.1} parent=1 // loop_pre_header
      _
    $region3: #{tpu_custom_call.1} parent=1 // loop_header
      %s13 = sphi 0, %s17
      %p14 = scmp.ge.s32.totalorder %s13, 4
      %s20 = sphi 0, %s39
      %s21 = sphi 0, %s35
      %s22 = sphi 0, %s31
      %s23 = sphi 0, %s20
      %s24 = sphi 0, %s21
      %s25 = sphi 0, %s22
      %s26 = sphi 0, %s23
      %s27 = sphi 0, %s24
      %s28 = sphi 0, %s25
      %s46 = sphi 0, %s48
      %s49 = sphi 0, %s46
      %s50 = sphi 0, %s49
      %s66 = sphi 0, %s50
      %s76 = sphi 0, %s78
      %s79 = sphi 0, %s76
      %s80 = sphi 0, %s79
      %s96 = sphi 0, %s80
    $region4: #{tpu_custom_call.1} parent=1 // loop_header_branch
      %16 = sbr.rel (%p14) target = $region8
    $region5: #{tpu_custom_call.1} parent=1 // loop_body
      %s18 = ssub.s32 %s13, 1
      %s19 = ssub.s32 %s13, 2
      %s29 = sadd.s32 1, %s22
      %p30 = scmp.ge.s32.totalorder %s29, 1
      %s31 = scalar_select %p30, 0, %s29
      %s32 = sadd.s32 1, %s21
      %s33 = scalar_select %p30, %s32, %s21
      %p34 = scmp.ge.s32.totalorder %s33, 1
      %s35 = scalar_select %p34, 0, %s33
      %s36 = sadd.s32 1, %s20
      %s37 = scalar_select %p34, %s36, %s20
      %p38 = scmp.ge.s32.totalorder %s37, 2
      %s39 = scalar_select %p38, 0, %s37
      %s40 = ssub.s32 %s20, %s39
      %s41 = ssub.s32 %s21, %s35
      %s42 = sor.u32 %s40, %s41
      %s43 = ssub.s32 %s22, %s31
      %s44 = sor.u32 %s42, %s43
      %p45 = scmp.eq.s32.totalorder %s44, 0
      %s47 = sadd.s32 %s46, 1
      %s48 = scalar_select %p45, %s46, %s47
      %p51 = pneg %p45
      %p52 = scmp.eq.s32.totalorder %s13, 1
      %p53 = por %p51, %p52
      %p54 = scmp.ne.s32.totalorder %s46, %s49
      %p55 = scmp.eq.s32.totalorder %s13, 0
      %p56 = por %p54, %p55
      %p57 = scmp.ne.s32.totalorder %s46, %s49
      %p58 = scmp.eq.s32.totalorder %s18, 1
      %p59 = por %p57, %p58
      %p60 = scmp.ne.s32.totalorder %s49, %s50
      %p61 = scmp.eq.s32.totalorder %s18, 0
      %p62 = por %p60, %p61
      %p63 = scmp.ne.s32.totalorder %s49, %s50
      %p64 = scmp.eq.s32.totalorder %s19, 1
      %p65 = por %p63, %p64
      %p67 = scmp.ne.s32.totalorder %s50, %s66
      %p68 = scmp.eq.s32.totalorder %s19, 0
      %p69 = por %p67, %p68
      %s70 = ssub.s32 %s20, %s39
      %s71 = ssub.s32 %s21, %s35
      %s72 = sor.u32 %s70, %s71
      %s73 = ssub.s32 %s22, %s31
      %s74 = sor.u32 %s72, %s73
      %p75 = scmp.eq.s32.totalorder %s74, 0
      %s77 = sadd.s32 %s76, 1
      %s78 = scalar_select %p75, %s76, %s77
      %p81 = pneg %p75
      %p82 = scmp.eq.s32.totalorder %s13, 1
      %p83 = por %p81, %p82
      %p84 = scmp.ne.s32.totalorder %s76, %s79
      %p85 = scmp.eq.s32.totalorder %s13, 0
      %p86 = por %p84, %p85
      %p87 = scmp.ne.s32.totalorder %s76, %s79
      %p88 = scmp.eq.s32.totalorder %s18, 1
      %p89 = por %p87, %p88
      %p90 = scmp.ne.s32.totalorder %s79, %s80
      %p91 = scmp.eq.s32.totalorder %s18, 0
      %p92 = por %p90, %p91
      %p93 = scmp.ne.s32.totalorder %s79, %s80
      %p94 = scmp.eq.s32.totalorder %s19, 1
      %p95 = por %p93, %p94
      %p97 = scmp.ne.s32.totalorder %s80, %s96
      %p98 = scmp.eq.s32.totalorder %s19, 0
      %p99 = por %p97, %p98
      %p100 = scmp.le.s32.totalorder 1, %s13
      %p101 = scmp.lt.s32.totalorder %s13, 3
      %p102 = pnand %p100, %p101
      %p103 = pneg %p102
      // Predicated region
      $region9: #{tpu_custom_call.1} parent=5 // pred_check
        _
      $region10: #{tpu_custom_call.1} parent=5 // pred_check_branch
        %105 = sbr.rel (%p102) target = $region12
      $region11: #{tpu_custom_call.1} parent=5 // pred_region
        %s106 = ssub.s32 %s13, 1
      $region12: #{tpu_custom_call.1} parent=5 // pred_fallthru
        _
      %p107 = scmp.lt.s32.totalorder %s13, 2
      // Predicated region
      $region13: #{tpu_custom_call.1} parent=5 // pred_check
        %p108 = pneg %p107
      $region14: #{tpu_custom_call.1} parent=5 // pred_check_branch
        %110 = sbr.rel (%p108) target = $region16
      $region15: #{tpu_custom_call.1} parent=5 // pred_region
        // Predicated region
        $region17: #{tpu_custom_call.1} parent=15 // pred_check
          %p111 = pneg %p56
        $region18: #{tpu_custom_call.1} parent=15 // pred_check_branch
          %113 = sbr.rel (%p111) target = $region20
        $region19: #{tpu_custom_call.1} parent=15 // pred_region
          %s114 = sand.u32 %s46, 1
          %s115 = scalar_lea.sflag [#allocation3], %s114
          %s116 = sand.u32 %s46, 1
          %s117 = smul.addr %s116, 512
          %s118 = scalar_lea.vmem [#allocation2], %s117
          %s119 = smul.u32 2, %s21
          %s120 = smul.u32 2, %s22
          %s122 = ssub.s32 8192, 8192
          %123 = vsyncadd %s115, %s122
          %s124 = smul.addr %s119, 2
          %s125 = sadd.s32 %s120, %s124
          %s126 = smul.addr %s20, 64
          %s127 = sadd.s32 %s125, %s126
          %s128 = smul.addr %s127, 128
          %s129 = scalar_lea.hbm %s0, %s128
          %s130 = sshll.u32 %s118, 4
          %s131 = int_to_ptr.vmem [resolvable:$true] %s130
          %136 = dma.hbm_to_vmem [thread:$0]  %s129, 8192, %s131, %s115, 256, 256, 16
        $region20: #{tpu_custom_call.1} parent=15 // pred_fallthru
          _
      $region16: #{tpu_custom_call.1} parent=5 // pred_fallthru
        _
      %p137 = scmp.le.s32.totalorder 1, %s13
      %p138 = scmp.lt.s32.totalorder %s13, 3
      %p139 = pnand %p137, %p138
      %p140 = pneg %p139
      // Predicated region
      $region21: #{tpu_custom_call.1} parent=5 // pred_check
        _
      $region22: #{tpu_custom_call.1} parent=5 // pred_check_branch
        %142 = sbr.rel (%p139) target = $region24
      $region23: #{tpu_custom_call.1} parent=5 // pred_region
        %s143 = ssub.s32 %s13, 1
        %s144 = sand.u32 %s49, 1
        %s145 = scalar_lea.sflag [#allocation3], %s144
        %s146 = sand.u32 %s49, 1
        %s147 = smul.addr %s146, 512
        %s148 = scalar_lea.vmem [#allocation2], %s147
        // Predicated region
        $region25: #{tpu_custom_call.1} parent=23 // pred_check
          %p149 = pneg %p62
        $region26: #{tpu_custom_call.1} parent=23 // pred_check_branch
          %151 = sbr.rel (%p149) target = $region28
        $region27: #{tpu_custom_call.1} parent=23 // pred_region
          %152 = dma.done %s145, 8192
        $region28: #{tpu_custom_call.1} parent=23 // pred_fallthru
          _
        %s153 = sand.u32 %s49, 1
        %s154 = scalar_lea.sflag [#allocation3], %s153
        %s155 = sand.u32 %s49, 1
        %s156 = smul.addr %s155, 512
        %s157 = scalar_lea.vmem [#allocation2], %s156
        %p158 = pneg %p62
        %p159 = pneg %p59
        %p160 = pneg %p92
        %p161 = pneg %p89
        %s162 = sand.u32 %s79, 1
        %s163 = scalar_lea.sflag [#allocation4], %s162
        %s164 = sand.u32 %s79, 1
        %s165 = smul.addr %s164, 32
        %s166 = scalar_lea.vmem [#allocation5], %s165
        %s167 = smul.u32 2, %s24
        %s168 = smul.u32 2, %s25
        %s169 = smul.u32 2, %s24
        %s170 = smul.u32 2, %s25
        loop: start=0, step=1, limit=2
        $region29: #{tpu_custom_call.1} parent=23 // loop_pre_header
          _
        $region30: #{tpu_custom_call.1} parent=23 // loop_header
          %s172 = sphi 0, %s176
          %p173 = scmp.ge.s32.totalorder %s172, 2
        $region31: #{tpu_custom_call.1} parent=23 // loop_header_branch
          %175 = sbr.rel (%p173) target = $region35
        $region32: #{tpu_custom_call.1} parent=23 // loop_body
          %s177 = smul.u32 %s172, 8
          %s178 = sshra.s32 %s177, 3
          %s179 = sand.u32 %s177, 7
          %s180 = smul.u32 %s178, 2
          %s181 = sadd.s32 0, %s180
          %s182 = smul.addr %s181, 8
          %s183 = scalar_lea.vmem %s148, %s182 [#allocation2]
          %v184 = vld [vmem:[%s183] sm:$0xff]
          %v185 = vld [vmem:[%s183 + $0x8] sm:$0xff]
          %s186 = sadd.s32 %s181, 4
          %s187 = smul.addr %s186, 8
          %s188 = scalar_lea.vmem %s148, %s187 [#allocation2]
          %v189 = vld [vmem:[%s188] sm:$0xff]
          %v190 = vld [vmem:[%s188 + $0x8] sm:$0xff]
          %vm191 = vcmp.gt.f32.partialorder %v189, %v184
          %vm192 = vcmp.gt.f32.partialorder %v190, %v185
          %v193 = vsel %vm191, %v189, %v184
          %v194 = vsel %vm192, %v190, %v185
          %v195 = vsel %vm191, 1, 0
          %v196 = vsel %vm192, 1, 0
          %s197 = sadd.s32 %s181, 8
          %s198 = smul.addr %s197, 8
          %s199 = scalar_lea.vmem %s148, %s198 [#allocation2]
          %v200 = vld [vmem:[%s199] sm:$0xff]
          %v201 = vld [vmem:[%s199 + $0x8] sm:$0xff]
          %vm202 = vcmp.gt.f32.partialorder %v200, %v193
          %vm203 = vcmp.gt.f32.partialorder %v201, %v194
          %v204 = vsel %vm202, %v200, %v193
          %v205 = vsel %vm203, %v201, %v194
          %v206 = vsel %vm202, 2, %v195
          %v207 = vsel %vm203, 2, %v196
          %s208 = sadd.s32 %s181, 12
          %s209 = smul.addr %s208, 8
          %s210 = scalar_lea.vmem %s148, %s209 [#allocation2]
          %v211 = vld [vmem:[%s210] sm:$0xff]
          %v212 = vld [vmem:[%s210 + $0x8] sm:$0xff]
          %vm213 = vcmp.gt.f32.partialorder %v211, %v204
          %vm214 = vcmp.gt.f32.partialorder %v212, %v205
          %v215 = vsel %vm213, %v211, %v204
          %v216 = vsel %vm214, %v212, %v205
          %v217 = vsel %vm213, 3, %v206
          %v218 = vsel %vm214, 3, %v207
          %s219 = sadd.s32 %s181, 16
          %s220 = smul.addr %s219, 8
          %s221 = scalar_lea.vmem %s148, %s220 [#allocation2]
          %v222 = vld [vmem:[%s221] sm:$0xff]
          %v223 = vld [vmem:[%s221 + $0x8] sm:$0xff]
          %vm224 = vcmp.gt.f32.partialorder %v222, %v215
          %vm225 = vcmp.gt.f32.partialorder %v223, %v216
          %v226 = vsel %vm224, %v222, %v215
          %v227 = vsel %vm225, %v223, %v216
          %v228 = vsel %vm224, 4, %v217
          %v229 = vsel %vm225, 4, %v218
          %s230 = sadd.s32 %s181, 20
          %s231 = smul.addr %s230, 8
          %s232 = scalar_lea.vmem %s148, %s231 [#allocation2]
          %v233 = vld [vmem:[%s232] sm:$0xff]
          %v234 = vld [vmem:[%s232 + $0x8] sm:$0xff]
          %vm235 = vcmp.gt.f32.partialorder %v233, %v226
          %vm236 = vcmp.gt.f32.partialorder %v234, %v227
          %v237 = vsel %vm235, %v233, %v226
          %v238 = vsel %vm236, %v234, %v227
          %v239 = vsel %vm235, 5, %v228
          %v240 = vsel %vm236, 5, %v229
          %s241 = sadd.s32 %s181, 24
          %s242 = smul.addr %s241, 8
          %s243 = scalar_lea.vmem %s148, %s242 [#allocation2]
          %v244 = vld [vmem:[%s243] sm:$0xff]
          %v245 = vld [vmem:[%s243 + $0x8] sm:$0xff]
          %vm246 = vcmp.gt.f32.partialorder %v244, %v237
          %vm247 = vcmp.gt.f32.partialorder %v245, %v238
          %v248 = vsel %vm246, %v244, %v237
          %v249 = vsel %vm247, %v245, %v238
          %v250 = vsel %vm246, 6, %v239
          %v251 = vsel %vm247, 6, %v240
          %s252 = sadd.s32 %s181, 28
          %s253 = smul.addr %s252, 8
          %s254 = scalar_lea.vmem %s148, %s253 [#allocation2]
          %v255 = vld [vmem:[%s254] sm:$0xff]
          %v256 = vld [vmem:[%s254 + $0x8] sm:$0xff]
          %vm257 = vcmp.gt.f32.partialorder %v255, %v248
          %vm258 = vcmp.gt.f32.partialorder %v256, %v249
          %v259 = vsel %vm257, %v255, %v248
          %v260 = vsel %vm258, %v256, %v249
          %v261 = vsel %vm257, 7, %v250
          %v262 = vsel %vm258, 7, %v251
          %s263 = sadd.s32 %s181, 32
          %s264 = smul.addr %s263, 8
          %s265 = scalar_lea.vmem %s148, %s264 [#allocation2]
          %v266 = vld [vmem:[%s265] sm:$0xff]
          %v267 = vld [vmem:[%s265 + $0x8] sm:$0xff]
          %vm268 = vcmp.gt.f32.partialorder %v266, %v259
          %vm269 = vcmp.gt.f32.partialorder %v267, %v260
          %v270 = vsel %vm268, %v266, %v259
          %v271 = vsel %vm269, %v267, %v260
          %v272 = vsel %vm268, 8, %v261
          %v273 = vsel %vm269, 8, %v262
          %s274 = sadd.s32 %s181, 36
          %s275 = smul.addr %s274, 8
          %s276 = scalar_lea.vmem %s148, %s275 [#allocation2]
          %v277 = vld [vmem:[%s276] sm:$0xff]
          %v278 = vld [vmem:[%s276 + $0x8] sm:$0xff]
          %vm279 = vcmp.gt.f32.partialorder %v277, %v270
          %vm280 = vcmp.gt.f32.partialorder %v278, %v271
          %v281 = vsel %vm279, %v277, %v270
          %v282 = vsel %vm280, %v278, %v271
          %v283 = vsel %vm279, 9, %v272
          %v284 = vsel %vm280, 9, %v273
          %s285 = sadd.s32 %s181, 40
          %s286 = smul.addr %s285, 8
          %s287 = scalar_lea.vmem %s148, %s286 [#allocation2]
          %v288 = vld [vmem:[%s287] sm:$0xff]
          %v289 = vld [vmem:[%s287 + $0x8] sm:$0xff]
          %vm290 = vcmp.gt.f32.partialorder %v288, %v281
          %vm291 = vcmp.gt.f32.partialorder %v289, %v282
          %v292 = vsel %vm290, %v288, %v281
          %v293 = vsel %vm291, %v289, %v282
          %v294 = vsel %vm290, 10, %v283
          %v295 = vsel %vm291, 10, %v284
          %s296 = sadd.s32 %s181, 44
          %s297 = smul.addr %s296, 8
          %s298 = scalar_lea.vmem %s148, %s297 [#allocation2]
          %v299 = vld [vmem:[%s298] sm:$0xff]
          %v300 = vld [vmem:[%s298 + $0x8] sm:$0xff]
          %vm301 = vcmp.gt.f32.partialorder %v299, %v292
          %vm302 = vcmp.gt.f32.partialorder %v300, %v293
          %v303 = vsel %vm301, %v299, %v292
          %v304 = vsel %vm302, %v300, %v293
          %v305 = vsel %vm301, 11, %v294
          %v306 = vsel %vm302, 11, %v295
          %s307 = sadd.s32 %s181, 48
          %s308 = smul.addr %s307, 8
          %s309 = scalar_lea.vmem %s148, %s308 [#allocation2]
          %v310 = vld [vmem:[%s309] sm:$0xff]
          %v311 = vld [vmem:[%s309 + $0x8] sm:$0xff]
          %vm312 = vcmp.gt.f32.partialorder %v310, %v303
          %vm313 = vcmp.gt.f32.partialorder %v311, %v304
          %v314 = vsel %vm312, %v310, %v303
          %v315 = vsel %vm313, %v311, %v304
          %v316 = vsel %vm312, 12, %v305
          %v317 = vsel %vm313, 12, %v306
          %s318 = sadd.s32 %s181, 52
          %s319 = smul.addr %s318, 8
          %s320 = scalar_lea.vmem %s148, %s319 [#allocation2]
          %v321 = vld [vmem:[%s320] sm:$0xff]
          %v322 = vld [vmem:[%s320 + $0x8] sm:$0xff]
          %vm323 = vcmp.gt.f32.partialorder %v321, %v314
          %vm324 = vcmp.gt.f32.partialorder %v322, %v315
          %v325 = vsel %vm323, %v321, %v314
          %v326 = vsel %vm324, %v322, %v315
          %v327 = vsel %vm323, 13, %v316
          %v328 = vsel %vm324, 13, %v317
          %s329 = sadd.s32 %s181, 56
          %s330 = smul.addr %s329, 8
          %s331 = scalar_lea.vmem %s148, %s330 [#allocation2]
          %v332 = vld [vmem:[%s331] sm:$0xff]
          %v333 = vld [vmem:[%s331 + $0x8] sm:$0xff]
          %vm334 = vcmp.gt.f32.partialorder %v332, %v325
          %vm335 = vcmp.gt.f32.partialorder %v333, %v326
          %v336 = vsel %vm334, %v332, %v325
          %v337 = vsel %vm335, %v333, %v326
          %v338 = vsel %vm334, 14, %v327
          %v339 = vsel %vm335, 14, %v328
          %s340 = sadd.s32 %s181, 60
          %s341 = smul.addr %s340, 8
          %s342 = scalar_lea.vmem %s148, %s341 [#allocation2]
          %v343 = vld [vmem:[%s342] sm:$0xff]
          %v344 = vld [vmem:[%s342 + $0x8] sm:$0xff]
          %vm345 = vcmp.gt.f32.partialorder %v343, %v336
          %vm346 = vcmp.gt.f32.partialorder %v344, %v337
          %v347 = vsel %vm345, 15, %v338
          %v348 = vsel %vm346, 15, %v339
          %v349 = vsub.s32 3, %v347
          %v350 = vsub.s32 3, %v348
          %vm351 = vcmp.gt.s32.totalorder %v349, 0
          %v352 = vsel %vm351, %v349, 0
          %vm353 = vcmp.gt.s32.totalorder %v350, 0
          %v354 = vsel %vm353, %v350, 0
          %v355 = vcvt.s32.f32 %v352
          %v356 = vcvt.s32.f32 %v354
          %v357 = vadd.s32 %v347, 4294967284
          %v358 = vadd.s32 %v348, 4294967284
          %vm359 = vcmp.gt.s32.totalorder %v357, 0
          %v360 = vsel %vm359, %v357, 0
          %vm361 = vcmp.gt.s32.totalorder %v358, 0
          %v362 = vsel %vm361, %v358, 0
          %v363 = vcvt.s32.f32 %v360
          %v364 = vcvt.s32.f32 %v362
          %v365 = vmul.f32 %v355, %v184
          %v366 = vmul.f32 %v356, %v185
          %v367 = vmul.f32 %v363, %v343
          %v368 = vmul.f32 %v364, %v344
          %v369 = vadd.f32 %v365, %v367
          %v370 = vadd.f32 %v366, %v368
          %v371 = vmul.f32 %v367, 15.0
          %v372 = vmul.f32 %v368, 15.0
          %v373 = vsub.s32 %v347, 2
          %v374 = vsub.s32 %v348, 2
          %v375 = vsub.s32 1, %v373
          %v376 = vsub.s32 1, %v374
          %vm377 = vcmp.le.u32.totalorder %v375, 4
          %vm378 = vcmp.le.u32.totalorder %v376, 4
          %v379 = vsel %vm377, %v189, 0.0
          %v380 = vsel %vm378, %v190, 0.0
          %v381 = vadd.f32 %v371, %v379
          %v382 = vadd.f32 %v372, %v380
          %v383 = vadd.f32 %v369, %v379
          %v384 = vadd.f32 %v370, %v380
          %v385 = vsub.s32 2, %v373
          %v386 = vsub.s32 2, %v374
          %vm387 = vcmp.le.u32.totalorder %v385, 4
          %vm388 = vcmp.le.u32.totalorder %v386, 4
          %v389 = vsel %vm387, %v200, 0.0
          %v390 = vsel %vm388, %v201, 0.0
          %v391 = vmul.f32 %v389, 2.0
          %v392 = vmul.f32 %v390, 2.0
          %v393 = vadd.f32 %v381, %v391
          %v394 = vadd.f32 %v382, %v392
          %v395 = vadd.f32 %v383, %v389
          %v396 = vadd.f32 %v384, %v390
          %v397 = vsub.s32 3, %v373
          %v398 = vsub.s32 3, %v374
          %vm399 = vcmp.le.u32.totalorder %v397, 4
          %vm400 = vcmp.le.u32.totalorder %v398, 4
          %v401 = vsel %vm399, %v211, 0.0
          %v402 = vsel %vm400, %v212, 0.0
          %v403 = vmul.f32 %v401, 3.0
          %v404 = vmul.f32 %v402, 3.0
          %v405 = vadd.f32 %v393, %v403
          %v406 = vadd.f32 %v394, %v404
          %v407 = vadd.f32 %v395, %v401
          %v408 = vadd.f32 %v396, %v402
          %v409 = vsub.s32 4, %v373
          %v410 = vsub.s32 4, %v374
          %vm411 = vcmp.le.u32.totalorder %v409, 4
          %vm412 = vcmp.le.u32.totalorder %v410, 4
          %v413 = vsel %vm411, %v222, 0.0
          %v414 = vsel %vm412, %v223, 0.0
          %v415 = vmul.f32 %v413, 4.0
          %v416 = vmul.f32 %v414, 4.0
          %v417 = vadd.f32 %v405, %v415
          %v418 = vadd.f32 %v406, %v416
          %v419 = vadd.f32 %v407, %v413
          %v420 = vadd.f32 %v408, %v414
          %v421 = vsub.s32 5, %v373
          %v422 = vsub.s32 5, %v374
          %vm423 = vcmp.le.u32.totalorder %v421, 4
          %vm424 = vcmp.le.u32.totalorder %v422, 4
          %v425 = vsel %vm423, %v233, 0.0
          %v426 = vsel %vm424, %v234, 0.0
          %v427 = vmul.f32 %v425, 5.0
          %v428 = vmul.f32 %v426, 5.0
          %v429 = vadd.f32 %v417, %v427
          %v430 = vadd.f32 %v418, %v428
          %v431 = vadd.f32 %v419, %v425
          %v432 = vadd.f32 %v420, %v426
          %v433 = vsub.s32 6, %v373
          %v434 = vsub.s32 6, %v374
          %vm435 = vcmp.le.u32.totalorder %v433, 4
          %vm436 = vcmp.le.u32.totalorder %v434, 4
          %v437 = vsel %vm435, %v244, 0.0
          %v438 = vsel %vm436, %v245, 0.0
          %v439 = vmul.f32 %v437, 6.0
          %v440 = vmul.f32 %v438, 6.0
          %v441 = vadd.f32 %v429, %v439
          %v442 = vadd.f32 %v430, %v440
          %v443 = vadd.f32 %v431, %v437
          %v444 = vadd.f32 %v432, %v438
          %v445 = vsub.s32 7, %v373
          %v446 = vsub.s32 7, %v374
          %vm447 = vcmp.le.u32.totalorder %v445, 4
          %vm448 = vcmp.le.u32.totalorder %v446, 4
          %v449 = vsel %vm447, %v255, 0.0
          %v450 = vsel %vm448, %v256, 0.0
          %v451 = vmul.f32 %v449, 7.0
          %v452 = vmul.f32 %v450, 7.0
          %v453 = vadd.f32 %v441, %v451
          %v454 = vadd.f32 %v442, %v452
          %v455 = vadd.f32 %v443, %v449
          %v456 = vadd.f32 %v444, %v450
          %v457 = vsub.s32 8, %v373
          %v458 = vsub.s32 8, %v374
          %vm459 = vcmp.le.u32.totalorder %v457, 4
          %vm460 = vcmp.le.u32.totalorder %v458, 4
          %v461 = vsel %vm459, %v266, 0.0
          %v462 = vsel %vm460, %v267, 0.0
          %v463 = vmul.f32 %v461, 8.0
          %v464 = vmul.f32 %v462, 8.0
          %v465 = vadd.f32 %v453, %v463
          %v466 = vadd.f32 %v454, %v464
          %v467 = vadd.f32 %v455, %v461
          %v468 = vadd.f32 %v456, %v462
          %v469 = vsub.s32 9, %v373
          %v470 = vsub.s32 9, %v374
          %vm471 = vcmp.le.u32.totalorder %v469, 4
          %vm472 = vcmp.le.u32.totalorder %v470, 4
          %v473 = vsel %vm471, %v277, 0.0
          %v474 = vsel %vm472, %v278, 0.0
          %v475 = vmul.f32 %v473, 9.0
          %v476 = vmul.f32 %v474, 9.0
          %v477 = vadd.f32 %v465, %v475
          %v478 = vadd.f32 %v466, %v476
          %v479 = vadd.f32 %v467, %v473
          %v480 = vadd.f32 %v468, %v474
          %v481 = vsub.s32 10, %v373
          %v482 = vsub.s32 10, %v374
          %vm483 = vcmp.le.u32.totalorder %v481, 4
          %vm484 = vcmp.le.u32.totalorder %v482, 4
          %v485 = vsel %vm483, %v288, 0.0
          %v486 = vsel %vm484, %v289, 0.0
          %v487 = vmul.f32 %v485, 10.0
          %v488 = vmul.f32 %v486, 10.0
          %v489 = vadd.f32 %v477, %v487
          %v490 = vadd.f32 %v478, %v488
          %v491 = vadd.f32 %v479, %v485
          %v492 = vadd.f32 %v480, %v486
          %v493 = vsub.s32 11, %v373
          %v494 = vsub.s32 11, %v374
          %vm495 = vcmp.le.u32.totalorder %v493, 4
          %vm496 = vcmp.le.u32.totalorder %v494, 4
          %v497 = vsel %vm495, %v299, 0.0
          %v498 = vsel %vm496, %v300, 0.0
          %v499 = vmul.f32 %v497, 11.0
          %v500 = vmul.f32 %v498, 11.0
          %v501 = vadd.f32 %v489, %v499
          %v502 = vadd.f32 %v490, %v500
          %v503 = vadd.f32 %v491, %v497
          %v504 = vadd.f32 %v492, %v498
          %v505 = vsub.s32 12, %v373
          %v506 = vsub.s32 12, %v374
          %vm507 = vcmp.le.u32.totalorder %v505, 4
          %vm508 = vcmp.le.u32.totalorder %v506, 4
          %v509 = vsel %vm507, %v310, 0.0
          %v510 = vsel %vm508, %v311, 0.0
          %v511 = vmul.f32 %v509, 12.0
          %v512 = vmul.f32 %v510, 12.0
          %v513 = vadd.f32 %v501, %v511
          %v514 = vadd.f32 %v502, %v512
          %v515 = vadd.f32 %v503, %v509
          %v516 = vadd.f32 %v504, %v510
          %v517 = vsub.s32 13, %v373
          %v518 = vsub.s32 13, %v374
          %vm519 = vcmp.le.u32.totalorder %v517, 4
          %vm520 = vcmp.le.u32.totalorder %v518, 4
          %v521 = vsel %vm519, %v321, 0.0
          %v522 = vsel %vm520, %v322, 0.0
          %v523 = vmul.f32 %v521, 13.0
          %v524 = vmul.f32 %v522, 13.0
          %v525 = vadd.f32 %v513, %v523
          %v526 = vadd.f32 %v514, %v524
          %v527 = vadd.f32 %v515, %v521
          %v528 = vadd.f32 %v516, %v522
          %v529 = vsub.s32 14, %v373
          %v530 = vsub.s32 14, %v374
          %vm531 = vcmp.le.u32.totalorder %v529, 4
          %vm532 = vcmp.le.u32.totalorder %v530, 4
          %v533 = vsel %vm531, %v332, 0.0
          %v534 = vsel %vm532, %v333, 0.0
          %v535 = vmul.f32 %v533, 14.0
          %v536 = vmul.f32 %v534, 14.0
          %v537 = vadd.f32 %v525, %v535
          %v538 = vadd.f32 %v526, %v536
          %v539 = vadd.f32 %v527, %v533
          %v540 = vadd.f32 %v528, %v534
          %v541 = vadd.f32 %v539, 1e-08
          %v542 = vadd.f32 %v540, 1e-08
          %v543 = vrcp.pop %v541
          %v544 = vrcp.pop %v542
          %v545 = vmul.f32 %v541, %v543
          %v546 = vmul.f32 %v542, %v544
          %v547 = vsub.f32 2.0, %v545
          %v548 = vsub.f32 2.0, %v546
          %v549 = vmul.f32 %v543, %v547
          %v550 = vmul.f32 %v544, %v548
          %v551 = vmul.f32 %v537, %v549
          %v552 = vmul.f32 %v538, %v550
          %v553 = vadd.f32 %v551, 2.0
          %v554 = vadd.f32 %v552, 2.0
          %s555 = smul.addr %s181, 8
          %s556 = scalar_lea.vmem %s166, %s555 [#allocation5]
          %557 = vst [vmem:[%s556] sm:$0xff] %v553
          %558 = vst [vmem:[%s556 + $0x8] sm:$0xff] %v554
        $region33: #{tpu_custom_call.1} parent=23 // loop_footer
          %s176 = sadd.s32 1, %s172
        $region34: #{tpu_custom_call.1} parent=23 // loop_footer_branch
          %171 = sbr.rel target = $region30
        $region35: #{tpu_custom_call.1} parent=23 // loop_exit
          _
        %s559 = sand.u32 %s79, 1
        %s560 = scalar_lea.sflag [#allocation4], %s559
        %s561 = sand.u32 %s79, 1
        %s562 = smul.addr %s561, 32
        %s563 = scalar_lea.vmem [#allocation5], %s562
        // Predicated region
        $region36: #{tpu_custom_call.1} parent=23 // pred_check
          %p564 = pneg %p89
        $region37: #{tpu_custom_call.1} parent=23 // pred_check_branch
          %566 = sbr.rel (%p564) target = $region39
        $region38: #{tpu_custom_call.1} parent=23 // pred_region
          %s567 = smul.u32 2, %s24
          %s568 = smul.u32 2, %s25
          %s570 = ssub.s32 512, 512
          %571 = vsyncadd %s560, %s570
          %s572 = smul.addr %s567, 2
          %s573 = sadd.s32 %s568, %s572
          %s574 = smul.addr %s23, 4
          %s575 = sadd.s32 %s573, %s574
          %s576 = smul.addr %s575, 128
          %s577 = scalar_lea.hbm %s1, %s576
          %s578 = sshll.u32 %s563, 4
          %s579 = int_to_ptr.vmem [resolvable:$true] %s578
          %584 = dma.vmem_to_hbm [thread:$0]  %s579, 512, %s577, %s560, 256, 256, 16
        $region39: #{tpu_custom_call.1} parent=23 // pred_fallthru
          _
      $region24: #{tpu_custom_call.1} parent=5 // pred_fallthru
        _
      %p585 = scmp.le.s32.totalorder 2, %s13
      // Predicated region
      $region40: #{tpu_custom_call.1} parent=5 // pred_check
        %p586 = pneg %p585
      $region41: #{tpu_custom_call.1} parent=5 // pred_check_branch
        %588 = sbr.rel (%p586) target = $region43
      $region42: #{tpu_custom_call.1} parent=5 // pred_region
        %s589 = ssub.s32 %s13, 2
        // Predicated region
        $region44: #{tpu_custom_call.1} parent=42 // pred_check
          %p590 = pneg %p95
        $region45: #{tpu_custom_call.1} parent=42 // pred_check_branch
          %592 = sbr.rel (%p590) target = $region47
        $region46: #{tpu_custom_call.1} parent=42 // pred_region
          %s593 = sand.u32 %s80, 1
          %s594 = scalar_lea.sflag [#allocation4], %s593
          %s595 = sand.u32 %s80, 1
          %s596 = smul.addr %s595, 32
          %s597 = scalar_lea.vmem [#allocation5], %s596
          %598 = dma.done %s594, 512
        $region47: #{tpu_custom_call.1} parent=42 // pred_fallthru
          _
      $region43: #{tpu_custom_call.1} parent=5 // pred_fallthru
        _
    $region6: #{tpu_custom_call.1} parent=1 // loop_footer
      %s17 = sadd.s32 1, %s13
    $region7: #{tpu_custom_call.1} parent=1 // loop_footer_branch
      %12 = sbr.rel target = $region3
    $region8: #{tpu_custom_call.1} parent=1 // loop_exit
      _
    %599 = vsyncpa [#allocation3], 1
    %s600 = scalar_lea.sflag [#allocation3], 1
    %601 = vsyncpa %s600, 1
    %602 = vsyncpa [#allocation4], 1
    %s603 = scalar_lea.sflag [#allocation4], 1
    %604 = vsyncpa %s603, 1

</llo_original>
